<compile_context>
chip_gen: v5e
topology: v5e:2x2
jax: 0.10.0
libtpu: 0.0.40
codegen_flags: <defaults>
</compile_context>

<pallas_src>
import math
from functools import partial

import jax
import jax.numpy as jnp
from jax import lax
from jax.experimental import pallas as pl
from jax.experimental.pallas import tpu as pltpu

_TARGET_BLOCK_BYTES = 4 * 1024 * 1024      # ~4 MiB per operand block
_MIN_SPLIT_BYTES = 512 * 1024              # force >=2 grid steps above this
_VMEM_LIMIT_BYTES = 32 * 1024 * 1024       # 3 operands x 2 bufs x 4 MiB = 24 MiB
_SUBLANE_FOR_ITEMSIZE = {4: 8, 2: 16, 1: 32}

ADD_PHASE = 1.0 - math.pi  # GeneralELU(1 - pi) used by ResBlock_phase (no maxv)


# ---------------------------------------------------------------------------
# Elementwise math (inside Pallas kernels)
# ---------------------------------------------------------------------------
def _elu(x):
    """ELU (alpha=1): single exp on the negative branch, clamped so exp never
    overflows for x > 0 (exp(min(x,0)) - 1 is exact at the extremes)."""
    zero = jnp.zeros((), x.dtype)
    one = jnp.ones((), x.dtype)
    xn = jnp.minimum(x, zero)
    return jnp.where(x > 0, x, jnp.exp(xn) - one)


def _general_elu_kernel(x_ref, o_ref, *, add, maxv):
    y = _elu(x_ref[...])
    if add is not None:
        y = y + jnp.asarray(add, y.dtype)
    if maxv is not None:
        y = jnp.minimum(y, jnp.asarray(maxv, y.dtype))
    o_ref[...] = y.astype(o_ref.dtype)


def _add_general_elu_kernel(a_ref, b_ref, o_ref, *, add, maxv):
    # Fused residual add + GeneralELU: one HBM read per input, one write.
    y = _elu(a_ref[...] + b_ref[...])
    if add is not None:
        y = y + jnp.asarray(add, y.dtype)
    if maxv is not None:
        y = jnp.minimum(y, jnp.asarray(maxv, y.dtype))
    o_ref[...] = y.astype(o_ref.dtype)


# ---------------------------------------------------------------------------
# Lane-dense elementwise pallas_call wrapper
# ---------------------------------------------------------------------------
def _lane_dense_layout(total, dtype):
    """Pick (lanes, rows, tile_rows) for a fully-flattened tensor.

    Returns None when no 128-multiple lane width divides the element count;
    callers then fall back to plain jnp (which XLA fuses) instead of paying
    jnp.pad + slice HBM copies.
    """
    itemsize = jnp.dtype(dtype).itemsize
    sublane = _SUBLANE_FOR_ITEMSIZE.get(itemsize, 8)
    lanes = None
    for c in (2048, 1024, 512, 256, 128):
        if total % c == 0:
            lanes = c
            break
    if lanes is None:
        return None
    rows = total // lanes
    row_bytes = lanes * itemsize
    max_tile_rows = max(sublane,
                        (_TARGET_BLOCK_BYTES // row_bytes // sublane) * sublane)
    tile_rows = min(rows, max_tile_rows)
    # Guarantee >=2 grid steps for mid/large tensors so DMA double-buffering
    # and v7x 2-TensorCore sharding engage (single-step grids serialize
    # in-DMA -> compute -> out-DMA and use only one core).
    if total * itemsize >= _MIN_SPLIT_BYTES and rows >= 2 * sublane:
        half_rows = max(sublane, (rows // 2 // sublane) * sublane)
        tile_rows = min(tile_rows, half_rows)
    return lanes, rows, tile_rows


def _elementwise_pallas(kernel, out_dtype, *arrays):
    """Run an elementwise kernel over same-shaped arrays, lane-dense layout.

    Returns None if the shape has no pad-free lane-dense layout (caller falls
    back to jnp)."""
    shape = arrays[0].shape
    total = math.prod(shape)
    layout = _lane_dense_layout(total, arrays[0].dtype)
    if layout is None:
        return None
    lanes, rows, tile_rows = layout

    flats = [a.reshape(rows, lanes) for a in arrays]
    spec = pl.BlockSpec((tile_rows, lanes), lambda i: (i, 0))
    out2 = pl.pallas_call(
        kernel,
        out_shape=jax.ShapeDtypeStruct((rows, lanes), out_dtype),
        grid_spec=pltpu.PrefetchScalarGridSpec(
            num_scalar_prefetch=0,
            grid=(pl.cdiv(rows, tile_rows),),
            in_specs=[spec] * len(arrays),
            out_specs=spec,
        ),
        compiler_params=pltpu.CompilerParams(
            dimension_semantics=("parallel",),
            vmem_limit_bytes=_VMEM_LIMIT_BYTES,
        ),
    )(*flats)
    return out2.reshape(shape)


def _jnp_general_elu(x, add=None, maxv=None):
    """Plain-jnp GeneralELU (fuses into neighboring XLA ops)."""
    y = jnp.where(x > 0, x, jnp.expm1(jnp.minimum(x, jnp.zeros((), x.dtype))))
    if add is not None:
        y = y + jnp.asarray(add, y.dtype)
    if maxv is not None:
        y = jnp.minimum(y, jnp.asarray(maxv, y.dtype))
    return y.astype(x.dtype)


def general_elu(x, add=None, maxv=None):
    """GeneralELU(add, maxv) elementwise via a Pallas TPU kernel."""
    out = _elementwise_pallas(
        partial(_general_elu_kernel, add=add, maxv=maxv), x.dtype, x)
    if out is None:
        return _jnp_general_elu(x, add=add, maxv=maxv)
    return out


def add_general_elu(a, b, add=None, maxv=None):
    """Fused (a + b) -> GeneralELU(add, maxv), single Pallas pass."""
    out = _elementwise_pallas(
        partial(_add_general_elu_kernel, add=add, maxv=maxv), a.dtype, a, b)
    if out is None:
        return _jnp_general_elu(a + b, add=add, maxv=maxv)
    return out


# ---------------------------------------------------------------------------
# ResBlock_phase building blocks (XLA ops for conv / pool; BN folded away)
# ---------------------------------------------------------------------------
def _fold_bn(w_oihw, b, gamma, beta, mean, var, eps=1e-5):
    """Fold inference BatchNorm2d (running stats) into conv weight & bias."""
    scale = gamma * lax.rsqrt(var + eps)                 # (Cout,)
    w_f = w_oihw * scale[:, None, None, None]
    b_f = (b - mean) * scale + beta
    return w_f, b_f


def _oihw_to_hwio(w):
    return jnp.transpose(w, (2, 3, 1, 0))


def _conv2d_nhwc(x, w_hwio, b, stride=1, padding=1):
    y = lax.conv_general_dilated(
        x, w_hwio,
        window_strides=(stride, stride),
        padding=((padding, padding), (padding, padding)),
        dimension_numbers=("NHWC", "HWIO", "NHWC"),
    )
    return y + b  # bias broadcasts over trailing channel axis


def _avg_pool2_ceil_nhwc(x):
    # nn.AvgPool2d(2, ceil_mode=True), NHWC.
    # TODO(synk): for odd H/W the trailing window is averaged over in-bounds
    #   elements only, which may differ from PyTorch's divisor corner case.
    ph = (-x.shape[1]) % 2
    pw = (-x.shape[2]) % 2
    pads = ((0, 0), (0, ph), (0, pw), (0, 0))
    zero = jnp.zeros((), x.dtype)
    s = lax.reduce_window(x, zero, lax.add, (1, 2, 2, 1), (1, 2, 2, 1), pads)
    c = lax.reduce_window(jnp.ones_like(x), zero, lax.add,
                          (1, 2, 2, 1), (1, 2, 2, 1), pads)
    return s / c


def resblock_phase_forward(params, x_nchw, stride=1):
    """ResBlock_phase.forward: GeneralELU(1-pi)(convs(x) + idconv(pool(x)))."""
    # Channels-last end-to-end: TPU conv lowering wants channels on the lane
    # axis; a single transpose at entry/exit replaces per-conv relayouts.
    x = jnp.transpose(x_nchw, (0, 2, 3, 1))

    # Fold inference BatchNorm into the conv weights/bias at trace time.
    w1, b1 = _fold_bn(params["w1"], params["b1"], params["g1"], params["be1"],
                      params["m1"], params["v1"])
    w2, b2 = _fold_bn(params["w2"], params["b2"], params["g2"], params["be2"],
                      params["m2"], params["v2"])

    h = _conv2d_nhwc(x, _oihw_to_hwio(w1), b1, stride=stride, padding=1)
    # Mid-block GeneralELU stays plain jnp so XLA fuses it into the conv
    # epilogue (a standalone Pallas pass would add an HBM round-trip).
    h = _jnp_general_elu(h, add=ADD_PHASE)
    h = _conv2d_nhwc(h, _oihw_to_hwio(w2), b2, stride=1, padding=1)

    idn = x if stride == 1 else _avg_pool2_ceil_nhwc(x)          # pool
    if "wid" in params:                                          # idconv (ni != nf)
        # TODO(synk): fuse this 1x1 conv into the final Pallas epilogue as a
        #   (rows, Cin) x (Cin, Cout) contraction over the channels-last view.
        idn = _conv2d_nhwc(idn, _oihw_to_hwio(params["wid"]), params["bid"],
                           stride=1, padding=0)

    out = add_general_elu(h, idn, add=ADD_PHASE)                 # Pallas fused
    return jnp.transpose(out, (0, 3, 1, 2))


resblock_phase_jit = jax.jit(resblock_phase_forward, static_argnames="stride")


# ---------------------------------------------------------------------------
# Pure-JAX references (NCHW, unfused BN — independent of the TPU path)
# ---------------------------------------------------------------------------
def _ref_conv2d_nchw(x, w, b, stride=1, padding=1):
    y = lax.conv_general_dilated(
        x, w, window_strides=(stride, stride),
        padding=((padding, padding), (padding, padding)),
        dimension_numbers=("NCHW", "OIHW", "NCHW"))
    return y + b[None, :, None, None]


def _ref_batch_norm(x, gamma, beta, mean, var, eps=1e-5):
    scale = gamma * lax.rsqrt(var + eps)
    shift = beta - mean * scale
    return x * scale[None, :, None, None] + shift[None, :, None, None]


def _ref_general_elu(x, add=None, maxv=None):
    y = jnp.where(x > 0, x, jnp.expm1(x))
    if add is not None:
        y = y + add
    if maxv is not None:
        y = jnp.minimum(y, maxv)
    return y.astype(x.dtype)


def _ref_avg_pool2_ceil_nchw(x):
    ph = (-x.shape[2]) % 2
    pw = (-x.shape[3]) % 2
    pads = ((0, 0), (0, 0), (0, ph), (0, pw))
    zero = jnp.zeros((), x.dtype)
    s = lax.reduce_window(x, zero, lax.add, (1, 1, 2, 2), (1, 1, 2, 2), pads)
    c = lax.reduce_window(jnp.ones_like(x), zero, lax.add,
                          (1, 1, 2, 2), (1, 1, 2, 2), pads)
    return s / c


def _ref_resblock(params, x, stride=1):
    h = _ref_conv2d_nchw(x, params["w1"], params["b1"], stride=stride, padding=1)
    h = _ref_batch_norm(h, params["g1"], params["be1"], params["m1"], params["v1"])
    h = _ref_general_elu(h, add=ADD_PHASE)
    h = _ref_conv2d_nchw(h, params["w2"], params["b2"], stride=1, padding=1)
    h = _ref_batch_norm(h, params["g2"], params["be2"], params["m2"], params["v2"])
    idn = x if stride == 1 else _ref_avg_pool2_ceil_nchw(x)
    if "wid" in params:
        idn = _ref_conv2d_nchw(idn, params["wid"], params["bid"],
                               stride=1, padding=0)
    return _ref_general_elu(h + idn, add=ADD_PHASE)


if __name__ == "__main__":
    key = jax.random.PRNGKey(0)
    batch, ni, nf, height, width = 2, 4, 4, 16, 16  # ni==nf, stride==1
    k = jax.random.split(key, 6)
    x = jax.random.normal(k[0], (batch, ni, height, width), jnp.float32)

    params = dict(
        w1=0.1 * jax.random.normal(k[1], (nf, ni, 3, 3), jnp.float32),
        b1=0.1 * jax.random.normal(k[2], (nf,), jnp.float32),
        g1=jnp.ones((nf,), jnp.float32), be1=jnp.zeros((nf,), jnp.float32),
        m1=jnp.zeros((nf,), jnp.float32), v1=jnp.ones((nf,), jnp.float32),
        w2=0.1 * jax.random.normal(k[3], (nf, nf, 3, 3), jnp.float32),
        b2=0.1 * jax.random.normal(k[4], (nf,), jnp.float32),
        g2=jnp.ones((nf,), jnp.float32), be2=jnp.zeros((nf,), jnp.float32),
        m2=jnp.zeros((nf,), jnp.float32), v2=jnp.ones((nf,), jnp.float32),
    )

    # Full ResBlock_phase forward (fused residual + GeneralELU as Pallas).
    out = jax.block_until_ready(resblock_phase_jit(params, x, stride=1))
    ref = _ref_resblock(params, x, stride=1)
    assert out.shape == x.shape and out.dtype == x.dtype
    assert jnp.allclose(out, ref, atol=1e-5, rtol=1e-5)

    # Standalone GeneralELU kernel: exercise add / maxv / plain paths,
    # including very negative inputs (old exp/log underflow corner).
    x2 = jnp.concatenate([x.reshape(-1), jnp.array([-200.0, -1e-6, 0.0, 50.0],
                                                   jnp.float32)])
    x2 = jnp.tile(x2, 2).reshape(2, -1)[:, : x.size // 2].reshape(x.shape)
    y = jax.block_until_ready(general_elu(x2, add=1.0, maxv=1.5))
    assert jnp.allclose(y, _ref_general_elu(x2, add=1.0, maxv=1.5),
                        atol=1e-5, rtol=1e-5)
    y2 = jax.block_until_ready(general_elu(x2))
    assert jnp.allclose(y2, _ref_general_elu(x2), atol=1e-5, rtol=1e-5)

    # Larger tensor (1 MiB): exercises the multi-step (>=2) parallel grid.
    xb = jax.random.normal(k[5], (1, 8, 128, 256), jnp.float32)
    yb = jax.block_until_ready(add_general_elu(xb, 0.5 * xb, add=ADD_PHASE))
    assert jnp.allclose(yb, _ref_general_elu(1.5 * xb, add=ADD_PHASE),
                        atol=1e-5, rtol=1e-5)

    print("KERNEL_OK")
</pallas_src>

<mosaic_0001>
module attributes {stable_mosaic.version = 11 : i64} {
  func.func @_add_general_elu_kernel(%arg0: i32, %arg1: memref<1x2048xf32, #tpu.memory_space<vmem>>, %arg2: memref<1x2048xf32, #tpu.memory_space<vmem>>, %arg3: memref<1x2048xf32, #tpu.memory_space<vmem>>) attributes {dimension_semantics = [#tpu.dimension_semantics<parallel>], iteration_bounds = array<i64: 1>, scalar_prefetch = 0 : i64, scratch_operands = 0 : i64, tpu.core_type = #tpu.core_type<tc>, window_params = [{transform_indices = @transform_0, window_bounds = array<i64: 1, 2048>}, {transform_indices = @transform_1, window_bounds = array<i64: 1, 2048>}, {transform_indices = @transform_2, window_bounds = array<i64: 1, 2048>}]} {
    %c0 = arith.constant 0 : index
    %c0_0 = arith.constant 0 : index
    %0 = vector.load %arg1[%c0, %c0_0] : memref<1x2048xf32, #tpu.memory_space<vmem>>, vector<1x2048xf32>
    %c0_1 = arith.constant 0 : index
    %c0_2 = arith.constant 0 : index
    %1 = vector.load %arg2[%c0_1, %c0_2] : memref<1x2048xf32, #tpu.memory_space<vmem>>, vector<1x2048xf32>
    %2 = arith.addf %0, %1 : vector<1x2048xf32>
    %cst = arith.constant 0.000000e+00 : f32
    %3 = vector.broadcast %cst : f32 to vector<1x2048xf32>
    %4 = arith.minimumf %2, %3 : vector<1x2048xf32>
    %cst_3 = arith.constant 0.000000e+00 : f32
    %5 = vector.broadcast %cst_3 : f32 to vector<1x2048xf32>
    %6 = arith.cmpf ogt, %2, %5 : vector<1x2048xf32>
    %7 = math.exp %4 : vector<1x2048xf32>
    %cst_4 = arith.constant 1.000000e+00 : f32
    %8 = vector.broadcast %cst_4 : f32 to vector<1x2048xf32>
    %9 = arith.subf %7, %8 : vector<1x2048xf32>
    %10 = arith.select %6, %2, %9 : vector<1x2048xi1>, vector<1x2048xf32>
    %cst_5 = arith.constant -2.14159274 : f32
    %11 = vector.broadcast %cst_5 : f32 to vector<1x2048xf32>
    %12 = arith.addf %10, %11 : vector<1x2048xf32>
    %c0_6 = arith.constant 0 : index
    %c0_7 = arith.constant 0 : index
    %13 = vector.load %arg3[%c0_6, %c0_7] : memref<1x2048xf32, #tpu.memory_space<vmem>>, vector<1x2048xf32>
    tpu.vector_store %arg3[%c0_6, %c0_7], %12 {strides = array<i32>} : memref<1x2048xf32, #tpu.memory_space<vmem>>, vector<1x2048xf32>,
    return
  }
  func.func @transform_0(%arg0: i32) -> (i32, i32) {
    %c0_i32 = arith.constant 0 : i32
    %c0_i32_0 = arith.constant 0 : i32
    return %arg0, %c0_i32 : i32, i32
  }
  func.func @transform_1(%arg0: i32) -> (i32, i32) {
    %c0_i32 = arith.constant 0 : i32
    %c0_i32_0 = arith.constant 0 : i32
    return %arg0, %c0_i32 : i32, i32
  }
  func.func @transform_2(%arg0: i32) -> (i32, i32) {
    %c0_i32 = arith.constant 0 : i32
    %c0_i32_0 = arith.constant 0 : i32
    return %arg0, %c0_i32 : i32, i32
  }
}

</mosaic_0001>

<llo_original>
// kernel: resblock_phase_forward.1
$region0: #{resblock_phase_forward.1}
  #allocation0 [shape = 'u32[]', space=smem, size = 0x4, offset = 0x4, fixed_abs, tag = 'smem constant byte address 0x4 - core index']
  #allocation1 [shape = 'u32[72,128]{1,0:T(1,128)}', space=vmem, size = 0x9000, scoped, tag = 'internal scratch']
  %s0 = inlined_call_operand.vmem [shape: f32[1,2048], index: 0, kind: input, shape index: {}]
  %s1 = inlined_call_operand.vmem [shape: f32[1,2048], index: 1, kind: input, shape index: {}]
  %s2 = inlined_call_operand.vmem [shape: f32[1,2048], index: 2, kind: output, shape index: {}]
  %s3 = sld [smem:[#allocation0]]
  $region18: #{resblock_phase_forward.1} parent=0
    _
  %s5 = ssub.s32 1, %s3
  %s6 = scalar_select 0, %s5, %s3
  // Predicated region
  $region2: #{resblock_phase_forward.1} parent=0 // pred_check
    _
  $region3: #{resblock_phase_forward.1} parent=0 // pred_check_branch
    %8 = sbr.rel (0) target = $region5
  $region4: #{resblock_phase_forward.1} parent=0 // pred_region
    _
  $region5: #{resblock_phase_forward.1} parent=0 // pred_fallthru
    _
  // Predicated region
  $region6: #{resblock_phase_forward.1} parent=0 // pred_check
    _
  $region7: #{resblock_phase_forward.1} parent=0 // pred_check_branch
    %10 = sbr.rel (0) target = $region9
  $region8: #{resblock_phase_forward.1} parent=0 // pred_region
    _
  $region9: #{resblock_phase_forward.1} parent=0 // pred_fallthru
    _
  %v11 = vld [vmem:[%s0] sm:$0xff]
  %v12 = vld [vmem:[%s0 + $0x8] sm:$0xff]
  %v13 = vld [vmem:[%s1] sm:$0xff]
  %v14 = vld [vmem:[%s1 + $0x8] sm:$0xff]
  %v15 = vadd.f32 %v11, %v13
  %v16 = vadd.f32 %v12, %v14
  %v17 = vmin.f32 %v15, 0.0
  %v18 = vmin.f32 %v16, 0.0
  %vm19 = vcmp.gt.f32.partialorder %v15, 0.0
  %vm20 = vcmp.gt.f32.partialorder %v16, 0.0
  %v21 = vmul.f32 %v17, 1.442695
  %v22 = vpow.pop %v21
  %v23 = vmul.f32 %v18, 1.442695
  %v24 = vpow.pop %v23
  %v25 = vsub.f32 %v22, 1.0
  %v26 = vsub.f32 %v24, 1.0
  %v27 = vsel %vm19, %v15, %v25
  %v28 = vsel %vm20, %v16, %v26
  %v29 = vadd.f32 %v27, -2.1415927
  %v30 = vadd.f32 %v28, -2.1415927
  %31 = vst [vmem:[%s2] sm:$0xff] %v29
  %32 = vst [vmem:[%s2 + $0x8] sm:$0xff] %v30
  // Predicated region
  $region10: #{resblock_phase_forward.1} parent=0 // pred_check
    _
  $region11: #{resblock_phase_forward.1} parent=0 // pred_check_branch
    %34 = sbr.rel (0) target = $region13
  $region12: #{resblock_phase_forward.1} parent=0 // pred_region
    _
  $region13: #{resblock_phase_forward.1} parent=0 // pred_fallthru
    _
  // Predicated region
  $region14: #{resblock_phase_forward.1} parent=0 // pred_check
    _
  $region15: #{resblock_phase_forward.1} parent=0 // pred_check_branch
    %36 = sbr.rel (0) target = $region17
  $region16: #{resblock_phase_forward.1} parent=0 // pred_region
    _
  $region17: #{resblock_phase_forward.1} parent=0 // pred_fallthru
    _

</llo_original>
